<compile_context>
chip_gen: v7x
topology: tpu7x:2x2x1
jax: 0.10.0
libtpu: 0.0.40
codegen_flags: <defaults>
</compile_context>

<pallas_src>
import numpy as np
import jax
import jax.numpy as jnp
from jax.experimental import pallas as pl
from jax.experimental.pallas import tpu as pltpu


def _round_up(x, m):
    return (x + m - 1) // m * m


def _build_slab_plan(embed_sizes, v_total, v_pad, v_slab):
    """Static plan: for each v-slab, which categorical features own lanes in it."""
    bounds = np.cumsum([0] + list(embed_sizes))
    plan = []
    for off in range(0, v_pad, v_slab):
        if off >= v_total:
            break                                   # fully-padded slabs contribute 0
        vs = min(v_slab, v_pad - off)
        feats = [j for j in range(len(embed_sizes))
                 if bounds[j] < off + vs and bounds[j + 1] > off]
        plan.append((off, vs, feats))
    return plan


def _make_kernel(slab_plan, tb, out_dtype):
    def kernel(numbers_ref, cats_ref, w_ref, owner_ref, local_ref,
               cat_params_ref, bias_ref, mask_ref, out_ref):
        # f32 -> bf16 cast on the VPU (free under DMA/MXU); avoids a wrapper-side
        # HBM read+write pre-cast pass.
        numbers = numbers_ref[...].astype(jnp.bfloat16)   # [TB, F]
        cats = cats_ref[...]                              # [TB, n_cat] i32

        # ---- numeric linear part (MXU, bf16 operands, f32 accumulate) ----
        acc = jnp.dot(numbers, w_ref[...], preferred_element_type=jnp.float32)  # [TB, Cpad]

        # ---- embedding-bag via owner-select multi-hot, chunked over v slabs ----
        # Each vocab lane is owned by exactly one categorical feature; slabs owned by
        # a single feature need just one compare (no select chain).
        for off, vs, feats in slab_plan:
            local = local_ref[:, off:off + vs]             # [1, vs] local category id (-1 pad)
            sel = jnp.broadcast_to(cats[:, feats[0]:feats[0] + 1], (tb, vs))
            if len(feats) > 1:
                owner = owner_ref[:, off:off + vs]         # [1, vs] owning feature id
                for j in feats[1:]:
                    sel = jnp.where(owner == j,
                                    jnp.broadcast_to(cats[:, j:j + 1], (tb, vs)),
                                    sel)
            multi_hot = (sel == local).astype(jnp.bfloat16)          # exact 0/1 in bf16
            acc = acc + jnp.dot(multi_hot, cat_params_ref[off:off + vs, :],
                                preferred_element_type=jnp.float32)  # [TB, Cpad]

        # ---- bias, clamp, softmax over the (padded) class lanes ----
        x = acc + bias_ref[...]
        x = jnp.clip(x, -50.0, 50.0)
        # Additive pad-lane mask must stay AFTER the clamp: x is then in [-50, 50] on
        # real lanes (exp cannot overflow, so max-subtraction is safely dropped) and
        # -1e30 on pad lanes (exp underflows to 0).
        x = x + mask_ref[...]
        e = jnp.exp(x)
        denom = jnp.sum(e, axis=1, keepdims=True)
        out_ref[...] = (e * pl.reciprocal(denom, approx=False)).astype(out_dtype)
    return kernel


def _vmem_limit_bytes(tb, F, n_cat, v_pad, c_pad, v_slab, out_itemsize):
    # residents (assume worst case double-buffered), rows sublane-padded to 8
    resident = 2 * (F * c_pad * 2 + v_pad * c_pad * 2
                    + 2 * 8 * v_pad * 4 + 2 * 8 * c_pad * 4)
    # double-buffered pipelined tiles (numbers f32, categories i32 lane-padded, out)
    pipelined = 2 * (tb * F * 4 + tb * _round_up(n_cat, 128) * 4
                     + tb * c_pad * out_itemsize)
    # in-kernel intermediates: sel (i32), multi_hot (bf16) per slab + f32 accumulators
    scratch = tb * v_slab * (4 + 2) + tb * c_pad * 8
    est = resident + pipelined + scratch
    # floor 32 MiB (raises v5e's 16 MiB scoped default), cap 48 MiB (v7x: 64 MiB/TC)
    return int(min(max(int(1.5 * est) + (4 << 20), 32 << 20), 48 << 20))


def _build_call(kernel, b_pad, tb, F, n_cat, v_pad, c_pad, out_dtype, vmem_limit,
                single_buffer_residents):
    def res_spec(shape):
        if single_buffer_residents:
            # constant index_map -> fetched once; single buffer avoids 2x VMEM waste
            return pl.BlockSpec(shape, lambda i: (0, 0), pipeline_mode=pl.Buffered(1))
        return pl.BlockSpec(shape, lambda i: (0, 0))

    grid_spec = pltpu.PrefetchScalarGridSpec(
        num_scalar_prefetch=0,
        grid=(b_pad // tb,),
        in_specs=[
            pl.BlockSpec((tb, F), lambda i: (i, 0)),        # numbers    (f32, pipelined)
            pl.BlockSpec((tb, n_cat), lambda i: (i, 0)),    # categories (i32, pipelined)
            res_spec((F, c_pad)),                           # weight.T   (resident)
            res_spec((1, v_pad)),                           # owner row  (resident)
            res_spec((1, v_pad)),                           # local row  (resident)
            res_spec((v_pad, c_pad)),                       # cat_params (resident)
            res_spec((1, c_pad)),                           # bias row   (resident)
            res_spec((1, c_pad)),                           # pad mask   (resident)
        ],
        out_specs=pl.BlockSpec((tb, c_pad), lambda i: (i, 0)),
    )
    return pl.pallas_call(
        kernel,
        out_shape=jax.ShapeDtypeStruct((b_pad, c_pad), out_dtype),
        grid_spec=grid_spec,
        compiler_params=pltpu.CompilerParams(
            dimension_semantics=("parallel",),              # megacore sharding (v7x)
            vmem_limit_bytes=vmem_limit),
    )


def cat_multiclass(numbers, categories, weight, cat_params, bias, embed_sizes,
                   *, tb=None, out_dtype=jnp.bfloat16, v_slab=512):
    """CatMulticlass forward: hot path in one Pallas kernel, params prepared once."""
    B, F = numbers.shape
    C = int(bias.shape[0])
    n_cat = len(embed_sizes)
    V = int(sum(embed_sizes))
    # TODO(synk): handle numeric_size == 0 / empty embed_sizes (optional CatLinear branches).
    assert F > 0 and n_cat > 0

    c_pad = _round_up(C, 128)            # keep 128 when C<=128: matmuls are DMA-hidden,
    v_pad = _round_up(V, 128)            # padding C further only inflates writeback
    v_slab = min(_round_up(v_slab, 128), v_pad)
    b8 = _round_up(B, 8)

    if tb is None:
        tb = min(1024, b8)               # big tile amortizes per-grid-step overhead
        if b8 >= 256 and tb == b8:
            tb = _round_up((b8 + 1) // 2, 8)   # >=2 grid steps -> v7x megacore sharding
    b_pad = _round_up(b8, tb)

    # Per-lane "owner feature" / "local category id" rows (host precompute, tiny).
    owner_np = np.full((1, v_pad), n_cat, np.int32)   # n_cat == never-selected sentinel
    local_np = np.full((1, v_pad), -1, np.int32)      # -1    == never-matching sentinel
    off = 0
    for j, s in enumerate(embed_sizes):
        owner_np[0, off:off + s] = j
        local_np[0, off:off + s] = np.arange(s, dtype=np.int32)
        off += s
    owner = jnp.asarray(owner_np)
    local = jnp.asarray(local_np)

    # Parameters: lane-dense 128-padded, matmul operands in bf16 (one-time cost).
    w_t = jnp.zeros((F, c_pad), jnp.bfloat16).at[:, :C].set(weight.T.astype(jnp.bfloat16))
    cp = jnp.zeros((v_pad, c_pad), jnp.bfloat16).at[:V, :C].set(cat_params.astype(jnp.bfloat16))
    b_row = jnp.zeros((1, c_pad), jnp.float32).at[0, :C].set(bias.astype(jnp.float32))
    mask_row = jnp.asarray(
        np.where(np.arange(c_pad) < C, 0.0, -1e30)[None, :].astype(np.float32))

    # Batch inputs: no pre-cast copies (kernel casts f32->bf16 on the VPU); pad only
    # when the batch is not already a tile multiple.
    nums = numbers.astype(jnp.float32)
    cats = categories.astype(jnp.int32)
    if b_pad != B:
        nums = jnp.pad(nums, ((0, b_pad - B), (0, 0)))
        cats = jnp.pad(cats, ((0, b_pad - B), (0, 0)))

    slab_plan = _build_slab_plan(embed_sizes, V, v_pad, v_slab)
    kernel = _make_kernel(slab_plan, tb, out_dtype)
    vmem_limit = _vmem_limit_bytes(tb, F, n_cat, v_pad, c_pad, v_slab,
                                   jnp.dtype(out_dtype).itemsize)

    args = (nums, cats, w_t, owner, local, cp, b_row, mask_row)
    try:
        out = _build_call(kernel, b_pad, tb, F, n_cat, v_pad, c_pad, out_dtype,
                          vmem_limit, single_buffer_residents=True)(*args)
    except Exception:
        # pipeline_mode=pl.Buffered(1) not supported on this jax version:
        # fall back to default double buffering (identical results, more VMEM).
        out = _build_call(kernel, b_pad, tb, F, n_cat, v_pad, c_pad, out_dtype,
                          vmem_limit, single_buffer_residents=False)(*args)

    # Callers that can consume the padded [b_pad, c_pad] buffer directly should do so
    # to avoid this extra slice pass.
    return out[:B, :C]


if __name__ == "__main__":
    # Small deterministic config consistent with CatMulticlass.__init__
    B = 10                      # not a multiple of 8: exercises the ragged-tail pad path
    numeric_size = 32
    embed_sizes = (4, 5, 7)
    output_size = 8
    n_cat = len(embed_sizes)
    V = sum(embed_sizes)

    key = jax.random.PRNGKey(0)
    k_num, k_w, k_cp, k_b, k_cat = jax.random.split(key, 5)

    # Random instead of the module's all-zeros init so the math is exercised non-trivially.
    numbers = jax.random.normal(k_num, (B, numeric_size), jnp.float32)
    weight = 0.1 * jax.random.normal(k_w, (output_size, numeric_size), jnp.float32)  # nn.Linear [out, in]
    cat_params = 0.1 * jax.random.normal(k_cp, (V, output_size), jnp.float32)
    bias = 0.1 * jax.random.normal(k_b, (output_size,), jnp.float32)

    # categories[:, j] in [0, embed_sizes[j])
    cat_keys = jax.random.split(k_cat, n_cat)
    categories = jnp.stack(
        [jax.random.randint(ck, (B,), 0, s) for ck, s in zip(cat_keys, embed_sizes)],
        axis=1,
    ).astype(jnp.int32)

    out = cat_multiclass(numbers, categories, weight, cat_params, bias, embed_sizes)
    out = jax.block_until_ready(out)

    # Pure-JAX f32 reference (matches the PyTorch module).
    es = jnp.asarray(embed_sizes, jnp.int32)
    embed_idx = jnp.cumsum(es) - es
    ref = bias[None, :] + numbers @ weight.T \
        + cat_params[categories + embed_idx[None, :]].sum(axis=1)
    ref = jnp.clip(ref, -50.0, 50.0)
    ref = jax.nn.softmax(ref, axis=1)

    # bf16 matmul operands + bf16 output -> relaxed tolerance vs the f32 reference.
    np.testing.assert_allclose(np.asarray(out, dtype=np.float32), np.asarray(ref),
                               rtol=4e-2, atol=5e-3)
    print("KERNEL_OK")
</pallas_src>

<mosaic_0001>
module attributes {stable_mosaic.version = 11 : i64} {
  func.func @kernel(%arg0: i32, %arg1: memref<16x32xf32, #tpu.memory_space<vmem>>, %arg2: memref<16x3xi32, #tpu.memory_space<vmem>>, %arg3: memref<32x128xbf16, #tpu.memory_space<vmem>>, %arg4: memref<1x128xi32, #tpu.memory_space<vmem>>, %arg5: memref<1x128xi32, #tpu.memory_space<vmem>>, %arg6: memref<128x128xbf16, #tpu.memory_space<vmem>>, %arg7: memref<1x128xf32, #tpu.memory_space<vmem>>, %arg8: memref<1x128xf32, #tpu.memory_space<vmem>>, %arg9: memref<16x128xbf16, #tpu.memory_space<vmem>>) attributes {dimension_semantics = [#tpu.dimension_semantics<parallel>], iteration_bounds = array<i64: 1>, scalar_prefetch = 0 : i64, scratch_operands = 0 : i64, tpu.core_type = #tpu.core_type<tc>, window_params = [{transform_indices = @transform_0, window_bounds = array<i64: 16, 32>}, {transform_indices = @transform_1, window_bounds = array<i64: 16, 3>}, {pipeline_mode = #tpu.pipeline_mode<synchronous>, transform_indices = @transform_2, window_bounds = array<i64: 32, 128>}, {pipeline_mode = #tpu.pipeline_mode<synchronous>, transform_indices = @transform_3, window_bounds = array<i64: 1, 128>}, {pipeline_mode = #tpu.pipeline_mode<synchronous>, transform_indices = @transform_4, window_bounds = array<i64: 1, 128>}, {pipeline_mode = #tpu.pipeline_mode<synchronous>, transform_indices = @transform_5, window_bounds = array<i64: 128, 128>}, {pipeline_mode = #tpu.pipeline_mode<synchronous>, transform_indices = @transform_6, window_bounds = array<i64: 1, 128>}, {pipeline_mode = #tpu.pipeline_mode<synchronous>, transform_indices = @transform_7, window_bounds = array<i64: 1, 128>}, {transform_indices = @transform_8, window_bounds = array<i64: 16, 128>}]} {
    %c0 = arith.constant 0 : index
    %c0_0 = arith.constant 0 : index
    %0 = vector.load %arg1[%c0, %c0_0] : memref<16x32xf32, #tpu.memory_space<vmem>>, vector<16x32xf32>
    %1 = arith.truncf %0 : vector<16x32xf32> to vector<16x32xbf16>
    %c0_1 = arith.constant 0 : index
    %c0_2 = arith.constant 0 : index
    %2 = vector.load %arg2[%c0_1, %c0_2] : memref<16x3xi32, #tpu.memory_space<vmem>>, vector<16x3xi32>
    %c0_3 = arith.constant 0 : index
    %c0_4 = arith.constant 0 : index
    %3 = vector.load %arg3[%c0_3, %c0_4] : memref<32x128xbf16, #tpu.memory_space<vmem>>, vector<32x128xbf16>
    %cst = arith.constant dense<0.000000e+00> : vector<16x128xf32>
    %4 = tpu.matmul %1, %3, %cst {dimension_numbers = #tpu.dot_dimension_numbers<[1], [0], [0], [1], [0, 0, 1, 1], [], []>} : vector<16x32xbf16>, vector<32x128xbf16>, vector<16x128xf32> -> vector<16x128xf32>
    %c0_5 = arith.constant 0 : index
    %c0_6 = arith.constant 0 : index
    %5 = vector.load %arg5[%c0_5, %c0_6] : memref<1x128xi32, #tpu.memory_space<vmem>>, vector<1x128xi32>
    %6 = vector.extract_strided_slice %2 {offsets = [0, 0], sizes = [16, 1], strides = [1, 1]} : vector<16x3xi32> to vector<16x1xi32>
    %7 = vector.shape_cast %6 : vector<16x1xi32> to vector<16x1xi32>
    %8 = vector.broadcast %7 : vector<16x1xi32> to vector<16x128xi32>
    %c0_7 = arith.constant 0 : index
    %c0_8 = arith.constant 0 : index
    %9 = vector.load %arg4[%c0_7, %c0_8] : memref<1x128xi32, #tpu.memory_space<vmem>>, vector<1x128xi32>
    %c1_i32 = arith.constant 1 : i32
    %10 = vector.broadcast %c1_i32 : i32 to vector<1x128xi32>
    %11 = arith.cmpi eq, %9, %10 : vector<1x128xi32>
    %12 = vector.extract_strided_slice %2 {offsets = [0, 1], sizes = [16, 1], strides = [1, 1]} : vector<16x3xi32> to vector<16x1xi32>
    %13 = vector.shape_cast %12 : vector<16x1xi32> to vector<16x1xi32>
    %14 = vector.broadcast %13 : vector<16x1xi32> to vector<16x128xi32>
    %15 = vector.shape_cast %11 : vector<1x128xi1> to vector<1x128xi1>
    %16 = vector.broadcast %15 : vector<1x128xi1> to vector<16x128xi1>
    %17 = arith.select %16, %14, %8 : vector<16x128xi1>, vector<16x128xi32>
    %c2_i32 = arith.constant 2 : i32
    %18 = vector.broadcast %c2_i32 : i32 to vector<1x128xi32>
    %19 = arith.cmpi eq, %9, %18 : vector<1x128xi32>
    %20 = vector.extract_strided_slice %2 {offsets = [0, 2], sizes = [16, 1], strides = [1, 1]} : vector<16x3xi32> to vector<16x1xi32>
    %21 = vector.shape_cast %20 : vector<16x1xi32> to vector<16x1xi32>
    %22 = vector.broadcast %21 : vector<16x1xi32> to vector<16x128xi32>
    %23 = vector.shape_cast %19 : vector<1x128xi1> to vector<1x128xi1>
    %24 = vector.broadcast %23 : vector<1x128xi1> to vector<16x128xi1>
    %25 = arith.select %24, %22, %17 : vector<16x128xi1>, vector<16x128xi32>
    %26 = vector.broadcast %5 : vector<1x128xi32> to vector<16x128xi32>
    %27 = arith.cmpi eq, %25, %26 : vector<16x128xi32>
    %28 = arith.extui %27 : vector<16x128xi1> to vector<16x128xi32>
    %29 = arith.sitofp %28 : vector<16x128xi32> to vector<16x128xf32>
    %30 = arith.truncf %29 : vector<16x128xf32> to vector<16x128xbf16>
    %c0_9 = arith.constant 0 : index
    %c0_10 = arith.constant 0 : index
    %31 = vector.load %arg6[%c0_9, %c0_10] : memref<128x128xbf16, #tpu.memory_space<vmem>>, vector<128x128xbf16>
    %cst_11 = arith.constant dense<0.000000e+00> : vector<16x128xf32>
    %32 = tpu.matmul %30, %31, %cst_11 {dimension_numbers = #tpu.dot_dimension_numbers<[1], [0], [0], [1], [0, 0, 1, 1], [], []>} : vector<16x128xbf16>, vector<128x128xbf16>, vector<16x128xf32> -> vector<16x128xf32>
    %33 = arith.addf %4, %32 : vector<16x128xf32>
    %c0_12 = arith.constant 0 : index
    %c0_13 = arith.constant 0 : index
    %34 = vector.load %arg7[%c0_12, %c0_13] : memref<1x128xf32, #tpu.memory_space<vmem>>, vector<1x128xf32>
    %35 = vector.broadcast %34 : vector<1x128xf32> to vector<16x128xf32>
    %36 = arith.addf %33, %35 : vector<16x128xf32>
    %cst_14 = arith.constant -5.000000e+01 : f32
    %cst_15 = arith.constant 5.000000e+01 : f32
    %37 = vector.broadcast %cst_14 : f32 to vector<16x128xf32>
    %38 = arith.maximumf %37, %36 : vector<16x128xf32>
    %39 = vector.broadcast %cst_15 : f32 to vector<16x128xf32>
    %40 = arith.minimumf %39, %38 : vector<16x128xf32>
    %c0_16 = arith.constant 0 : index
    %c0_17 = arith.constant 0 : index
    %41 = vector.load %arg8[%c0_16, %c0_17] : memref<1x128xf32, #tpu.memory_space<vmem>>, vector<1x128xf32>
    %42 = vector.broadcast %41 : vector<1x128xf32> to vector<16x128xf32>
    %43 = arith.addf %40, %42 : vector<16x128xf32>
    %44 = math.exp %43 : vector<16x128xf32>
    %cst_18 = arith.constant dense<0.000000e+00> : vector<16xf32>
    %45 = vector.multi_reduction <add>, %44, %cst_18 [1] : vector<16x128xf32> to vector<16xf32>
    %46 = vector.shape_cast %45 : vector<16xf32> to vector<16x1xf32>
    %47 = tpu.reciprocal %46 : vector<16x1xf32> -> vector<16x1xf32>
    %48 = vector.broadcast %47 : vector<16x1xf32> to vector<16x128xf32>
    %49 = arith.mulf %44, %48 : vector<16x128xf32>
    %50 = arith.truncf %49 : vector<16x128xf32> to vector<16x128xbf16>
    %c0_19 = arith.constant 0 : index
    %c0_20 = arith.constant 0 : index
    %51 = vector.load %arg9[%c0_19, %c0_20] : memref<16x128xbf16, #tpu.memory_space<vmem>>, vector<16x128xbf16>
    tpu.vector_store %arg9[%c0_19, %c0_20], %50 {strides = array<i32>} : memref<16x128xbf16, #tpu.memory_space<vmem>>, vector<16x128xbf16>,
    return
  }
  func.func @transform_0(%arg0: i32) -> (i32, i32) {
    %c0_i32 = arith.constant 0 : i32
    %c0_i32_0 = arith.constant 0 : i32
    return %arg0, %c0_i32 : i32, i32
  }
  func.func @transform_1(%arg0: i32) -> (i32, i32) {
    %c0_i32 = arith.constant 0 : i32
    %c0_i32_0 = arith.constant 0 : i32
    return %arg0, %c0_i32 : i32, i32
  }
  func.func @transform_2(%arg0: i32) -> (i32, i32) {
    %c0_i32 = arith.constant 0 : i32
    %c0_i32_0 = arith.constant 0 : i32
    %c0_i32_1 = arith.constant 0 : i32
    return %c0_i32, %c0_i32_0 : i32, i32
  }
  func.func @transform_3(%arg0: i32) -> (i32, i32) {
    %c0_i32 = arith.constant 0 : i32
    %c0_i32_0 = arith.constant 0 : i32
    %c0_i32_1 = arith.constant 0 : i32
    return %c0_i32, %c0_i32_0 : i32, i32
  }
  func.func @transform_4(%arg0: i32) -> (i32, i32) {
    %c0_i32 = arith.constant 0 : i32
    %c0_i32_0 = arith.constant 0 : i32
    %c0_i32_1 = arith.constant 0 : i32
    return %c0_i32, %c0_i32_0 : i32, i32
  }
  func.func @transform_5(%arg0: i32) -> (i32, i32) {
    %c0_i32 = arith.constant 0 : i32
    %c0_i32_0 = arith.constant 0 : i32
    %c0_i32_1 = arith.constant 0 : i32
    return %c0_i32, %c0_i32_0 : i32, i32
  }
  func.func @transform_6(%arg0: i32) -> (i32, i32) {
    %c0_i32 = arith.constant 0 : i32
    %c0_i32_0 = arith.constant 0 : i32
    %c0_i32_1 = arith.constant 0 : i32
    return %c0_i32, %c0_i32_0 : i32, i32
  }
  func.func @transform_7(%arg0: i32) -> (i32, i32) {
    %c0_i32 = arith.constant 0 : i32
    %c0_i32_0 = arith.constant 0 : i32
    %c0_i32_1 = arith.constant 0 : i32
    return %c0_i32, %c0_i32_0 : i32, i32
  }
  func.func @transform_8(%arg0: i32) -> (i32, i32) {
    %c0_i32 = arith.constant 0 : i32
    %c0_i32_0 = arith.constant 0 : i32
    return %arg0, %c0_i32 : i32, i32
  }
}

module attributes {stable_mosaic.version = 11 : i64} {
  func.func @kernel(%arg0: i32, %arg1: memref<16x32xf32, #tpu.memory_space<vmem>>, %arg2: memref<16x3xi32, #tpu.memory_space<vmem>>, %arg3: memref<32x128xbf16, #tpu.memory_space<vmem>>, %arg4: memref<1x128xi32, #tpu.memory_space<vmem>>, %arg5: memref<1x128xi32, #tpu.memory_space<vmem>>, %arg6: memref<128x128xbf16, #tpu.memory_space<vmem>>, %arg7: memref<1x128xf32, #tpu.memory_space<vmem>>, %arg8: memref<1x128xf32, #tpu.memory_space<vmem>>, %arg9: memref<16x128xbf16, #tpu.memory_space<vmem>>) attributes {dimension_semantics = [#tpu.dimension_semantics<parallel>], iteration_bounds = array<i64: 1>, scalar_prefetch = 0 : i64, scratch_operands = 0 : i64, tpu.core_type = #tpu.core_type<tc>, window_params = [{transform_indices = @transform_0, window_bounds = array<i64: 16, 32>}, {transform_indices = @transform_1, window_bounds = array<i64: 16, 3>}, {pipeline_mode = #tpu.pipeline_mode<synchronous>, transform_indices = @transform_2, window_bounds = array<i64: 32, 128>}, {pipeline_mode = #tpu.pipeline_mode<synchronous>, transform_indices = @transform_3, window_bounds = array<i64: 1, 128>}, {pipeline_mode = #tpu.pipeline_mode<synchronous>, transform_indices = @transform_4, window_bounds = array<i64: 1, 128>}, {pipeline_mode = #tpu.pipeline_mode<synchronous>, transform_indices = @transform_5, window_bounds = array<i64: 128, 128>}, {pipeline_mode = #tpu.pipeline_mode<synchronous>, transform_indices = @transform_6, window_bounds = array<i64: 1, 128>}, {pipeline_mode = #tpu.pipeline_mode<synchronous>, transform_indices = @transform_7, window_bounds = array<i64: 1, 128>}, {transform_indices = @transform_8, window_bounds = array<i64: 16, 128>}]} {
    %c0 = arith.constant 0 : index
    %c0_0 = arith.constant 0 : index
    %0 = vector.load %arg1[%c0, %c0_0] : memref<16x32xf32, #tpu.memory_space<vmem>>, vector<16x32xf32>
    %1 = arith.truncf %0 : vector<16x32xf32> to vector<16x32xbf16>
    %c0_1 = arith.constant 0 : index
    %c0_2 = arith.constant 0 : index
    %2 = vector.load %arg2[%c0_1, %c0_2] : memref<16x3xi32, #tpu.memory_space<vmem>>, vector<16x3xi32>
    %c0_3 = arith.constant 0 : index
    %c0_4 = arith.constant 0 : index
    %3 = vector.load %arg3[%c0_3, %c0_4] : memref<32x128xbf16, #tpu.memory_space<vmem>>, vector<32x128xbf16>
    %cst = arith.constant dense<0.000000e+00> : vector<16x128xf32>
    %4 = tpu.matmul %1, %3, %cst {dimension_numbers = #tpu.dot_dimension_numbers<[1], [0], [0], [1], [0, 0, 1, 1], [], []>} : vector<16x32xbf16>, vector<32x128xbf16>, vector<16x128xf32> -> vector<16x128xf32>
    %c0_5 = arith.constant 0 : index
    %c0_6 = arith.constant 0 : index
    %5 = vector.load %arg5[%c0_5, %c0_6] : memref<1x128xi32, #tpu.memory_space<vmem>>, vector<1x128xi32>
    %6 = vector.extract_strided_slice %2 {offsets = [0, 0], sizes = [16, 1], strides = [1, 1]} : vector<16x3xi32> to vector<16x1xi32>
    %7 = vector.shape_cast %6 : vector<16x1xi32> to vector<16x1xi32>
    %8 = vector.broadcast %7 : vector<16x1xi32> to vector<16x128xi32>
    %c0_7 = arith.constant 0 : index
    %c0_8 = arith.constant 0 : index
    %9 = vector.load %arg4[%c0_7, %c0_8] : memref<1x128xi32, #tpu.memory_space<vmem>>, vector<1x128xi32>
    %c1_i32 = arith.constant 1 : i32
    %10 = vector.broadcast %c1_i32 : i32 to vector<1x128xi32>
    %11 = arith.cmpi eq, %9, %10 : vector<1x128xi32>
    %12 = vector.extract_strided_slice %2 {offsets = [0, 1], sizes = [16, 1], strides = [1, 1]} : vector<16x3xi32> to vector<16x1xi32>
    %13 = vector.shape_cast %12 : vector<16x1xi32> to vector<16x1xi32>
    %14 = vector.broadcast %13 : vector<16x1xi32> to vector<16x128xi32>
    %15 = vector.shape_cast %11 : vector<1x128xi1> to vector<1x128xi1>
    %16 = vector.broadcast %15 : vector<1x128xi1> to vector<16x128xi1>
    %17 = arith.select %16, %14, %8 : vector<16x128xi1>, vector<16x128xi32>
    %c2_i32 = arith.constant 2 : i32
    %18 = vector.broadcast %c2_i32 : i32 to vector<1x128xi32>
    %19 = arith.cmpi eq, %9, %18 : vector<1x128xi32>
    %20 = vector.extract_strided_slice %2 {offsets = [0, 2], sizes = [16, 1], strides = [1, 1]} : vector<16x3xi32> to vector<16x1xi32>
    %21 = vector.shape_cast %20 : vector<16x1xi32> to vector<16x1xi32>
    %22 = vector.broadcast %21 : vector<16x1xi32> to vector<16x128xi32>
    %23 = vector.shape_cast %19 : vector<1x128xi1> to vector<1x128xi1>
    %24 = vector.broadcast %23 : vector<1x128xi1> to vector<16x128xi1>
    %25 = arith.select %24, %22, %17 : vector<16x128xi1>, vector<16x128xi32>
    %26 = vector.broadcast %5 : vector<1x128xi32> to vector<16x128xi32>
    %27 = arith.cmpi eq, %25, %26 : vector<16x128xi32>
    %28 = arith.extui %27 : vector<16x128xi1> to vector<16x128xi32>
    %29 = arith.sitofp %28 : vector<16x128xi32> to vector<16x128xf32>
    %30 = arith.truncf %29 : vector<16x128xf32> to vector<16x128xbf16>
    %c0_9 = arith.constant 0 : index
    %c0_10 = arith.constant 0 : index
    %31 = vector.load %arg6[%c0_9, %c0_10] : memref<128x128xbf16, #tpu.memory_space<vmem>>, vector<128x128xbf16>
    %cst_11 = arith.constant dense<0.000000e+00> : vector<16x128xf32>
    %32 = tpu.matmul %30, %31, %cst_11 {dimension_numbers = #tpu.dot_dimension_numbers<[1], [0], [0], [1], [0, 0, 1, 1], [], []>} : vector<16x128xbf16>, vector<128x128xbf16>, vector<16x128xf32> -> vector<16x128xf32>
    %33 = arith.addf %4, %32 : vector<16x128xf32>
    %c0_12 = arith.constant 0 : index
    %c0_13 = arith.constant 0 : index
    %34 = vector.load %arg7[%c0_12, %c0_13] : memref<1x128xf32, #tpu.memory_space<vmem>>, vector<1x128xf32>
    %35 = vector.broadcast %34 : vector<1x128xf32> to vector<16x128xf32>
    %36 = arith.addf %33, %35 : vector<16x128xf32>
    %cst_14 = arith.constant -5.000000e+01 : f32
    %cst_15 = arith.constant 5.000000e+01 : f32
    %37 = vector.broadcast %cst_14 : f32 to vector<16x128xf32>
    %38 = arith.maximumf %37, %36 : vector<16x128xf32>
    %39 = vector.broadcast %cst_15 : f32 to vector<16x128xf32>
    %40 = arith.minimumf %39, %38 : vector<16x128xf32>
    %c0_16 = arith.constant 0 : index
    %c0_17 = arith.constant 0 : index
    %41 = vector.load %arg8[%c0_16, %c0_17] : memref<1x128xf32, #tpu.memory_space<vmem>>, vector<1x128xf32>
    %42 = vector.broadcast %41 : vector<1x128xf32> to vector<16x128xf32>
    %43 = arith.addf %40, %42 : vector<16x128xf32>
    %44 = math.exp %43 : vector<16x128xf32>
    %cst_18 = arith.constant dense<0.000000e+00> : vector<16xf32>
    %45 = vector.multi_reduction <add>, %44, %cst_18 [1] : vector<16x128xf32> to vector<16xf32>
    %46 = vector.shape_cast %45 : vector<16xf32> to vector<16x1xf32>
    %47 = tpu.reciprocal %46 : vector<16x1xf32> -> vector<16x1xf32>
    %48 = vector.broadcast %47 : vector<16x1xf32> to vector<16x128xf32>
    %49 = arith.mulf %44, %48 : vector<16x128xf32>
    %50 = arith.truncf %49 : vector<16x128xf32> to vector<16x128xbf16>
    %c0_19 = arith.constant 0 : index
    %c0_20 = arith.constant 0 : index
    %51 = vector.load %arg9[%c0_19, %c0_20] : memref<16x128xbf16, #tpu.memory_space<vmem>>, vector<16x128xbf16>
    tpu.vector_store %arg9[%c0_19, %c0_20], %50 {strides = array<i32>} : memref<16x128xbf16, #tpu.memory_space<vmem>>, vector<16x128xbf16>,
    return
  }
  func.func @transform_0(%arg0: i32) -> (i32, i32) {
    %c0_i32 = arith.constant 0 : i32
    %c0_i32_0 = arith.constant 0 : i32
    return %arg0, %c0_i32 : i32, i32
  }
  func.func @transform_1(%arg0: i32) -> (i32, i32) {
    %c0_i32 = arith.constant 0 : i32
    %c0_i32_0 = arith.constant 0 : i32
    return %arg0, %c0_i32 : i32, i32
  }
  func.func @transform_2(%arg0: i32) -> (i32, i32) {
    %c0_i32 = arith.constant 0 : i32
    %c0_i32_0 = arith.constant 0 : i32
    %c0_i32_1 = arith.constant 0 : i32
    return %c0_i32, %c0_i32_0 : i32, i32
  }
  func.func @transform_3(%arg0: i32) -> (i32, i32) {
    %c0_i32 = arith.constant 0 : i32
    %c0_i32_0 = arith.constant 0 : i32
    %c0_i32_1 = arith.constant 0 : i32
    return %c0_i32, %c0_i32_0 : i32, i32
  }
  func.func @transform_4(%arg0: i32) -> (i32, i32) {
    %c0_i32 = arith.constant 0 : i32
    %c0_i32_0 = arith.constant 0 : i32
    %c0_i32_1 = arith.constant 0 : i32
    return %c0_i32, %c0_i32_0 : i32, i32
  }
  func.func @transform_5(%arg0: i32) -> (i32, i32) {
    %c0_i32 = arith.constant 0 : i32
    %c0_i32_0 = arith.constant 0 : i32
    %c0_i32_1 = arith.constant 0 : i32
    return %c0_i32, %c0_i32_0 : i32, i32
  }
  func.func @transform_6(%arg0: i32) -> (i32, i32) {
    %c0_i32 = arith.constant 0 : i32
    %c0_i32_0 = arith.constant 0 : i32
    %c0_i32_1 = arith.constant 0 : i32
    return %c0_i32, %c0_i32_0 : i32, i32
  }
  func.func @transform_7(%arg0: i32) -> (i32, i32) {
    %c0_i32 = arith.constant 0 : i32
    %c0_i32_0 = arith.constant 0 : i32
    %c0_i32_1 = arith.constant 0 : i32
    return %c0_i32, %c0_i32_0 : i32, i32
  }
  func.func @transform_8(%arg0: i32) -> (i32, i32) {
    %c0_i32 = arith.constant 0 : i32
    %c0_i32_0 = arith.constant 0 : i32
    return %arg0, %c0_i32 : i32, i32
  }
}

</mosaic_0001>

<llo_original>
// kernel: tpu_custom_call.1
$region0: #{tpu_custom_call.1}
  #allocation0 [shape = 'u32[]', space=smem, size = 0x4, offset = 0x4, fixed_abs, tag = 'smem constant byte address 0x4 - core index']
  #allocation1 [shape = 'u32[144,128]{1,0:T(1,128)}', space=vmem, size = 0x12000, scoped, tag = 'internal scratch']
  %s0 = inlined_call_operand.vmem [shape: f32[16,32], index: 0, kind: input, shape index: {}]
  %s1 = inlined_call_operand.vmem [shape: s32[16,3], index: 1, kind: input, shape index: {}]
  %s2 = inlined_call_operand.hbm [shape: bf16[32,128], index: 2, kind: input, shape index: {}]
  %s3 = inlined_call_operand.vmem [shape: s32[1,128], index: 3, kind: input, shape index: {}]
  %s4 = inlined_call_operand.vmem [shape: s32[1,128], index: 4, kind: input, shape index: {}]
  %s5 = inlined_call_operand.hbm [shape: bf16[128,128], index: 5, kind: input, shape index: {}]
  %s6 = inlined_call_operand.vmem [shape: f32[1,128], index: 6, kind: input, shape index: {}]
  %s7 = inlined_call_operand.vmem [shape: f32[1,128], index: 7, kind: input, shape index: {}]
  %s8 = inlined_call_operand.hbm [shape: bf16[16,128], index: 8, kind: output, shape index: {}]
  %s9 = sld [smem:[#allocation0]]
  $region50: #{tpu_custom_call.1} parent=0
    _
  %s11 = ssub.s32 1, %s9
  %s12 = scalar_select 0, %s11, %s9
  $region1: #{tpu_custom_call.1} parent=0
    #allocation2 [shape = 'u8[8192]{0}', space=vmem, size = 0x2000, scoped, tag = 'input window, operand 2, single buffered']
    #allocation3 [shape = 's32[1]{0}', space=sflag, size = 0x4, scoped, tag = 'scoped memory for tpu_custom_call.1']
    #allocation4 [shape = 's32[1]{0}', space=sflag, size = 0x4, scoped, tag = 'scoped memory for tpu_custom_call.1']
    #allocation5 [shape = 'u8[32768]{0}', space=vmem, size = 0x8000, scoped, tag = 'input window, operand 5, single buffered']
    #allocation6 [shape = 's32[1]{0}', space=sflag, size = 0x4, scoped, tag = 'scoped memory for tpu_custom_call.1']
    #allocation7 [shape = 'u8[4096]{0}', space=vmem, size = 0x1000, scoped, tag = 'output window, operand 0, single buffered']
    %13 = vsyncpa [#allocation3], 0
    %14 = vsyncpa [#allocation6], 0
    %15 = vsyncpa [#allocation4], 0
    // Predicated region
    $region2: #{tpu_custom_call.1} parent=1 // pred_check
      _
    $region3: #{tpu_custom_call.1} parent=1 // pred_check_branch
      %17 = sbr.rel (0) target = $region5
    $region4: #{tpu_custom_call.1} parent=1 // pred_region
      _
    $region5: #{tpu_custom_call.1} parent=1 // pred_fallthru
      _
    // Predicated region
    $region6: #{tpu_custom_call.1} parent=1 // pred_check
      _
    $region7: #{tpu_custom_call.1} parent=1 // pred_check_branch
      %19 = sbr.rel (0) target = $region9
    $region8: #{tpu_custom_call.1} parent=1 // pred_region
      _
    $region9: #{tpu_custom_call.1} parent=1 // pred_fallthru
      _
    // Predicated region
    $region10: #{tpu_custom_call.1} parent=1 // pred_check
      _
    $region11: #{tpu_custom_call.1} parent=1 // pred_check_branch
      %21 = sbr.rel (0) target = $region13
    $region12: #{tpu_custom_call.1} parent=1 // pred_region
      %s23 = ssub.s32 256, 256
      %24 = vsyncadd [#allocation3], %s23
      %s25 = sshll.u32 [#allocation2], 4
      %s26 = int_to_ptr.vmem [resolvable:$true] %s25
      %31 = dma.hbm_to_vmem [thread:$0]  %s2, 256, %s26, [#allocation3], 64, 64, 4
    $region13: #{tpu_custom_call.1} parent=1 // pred_fallthru
      _
    // Predicated region
    $region14: #{tpu_custom_call.1} parent=1 // pred_check
      _
    $region15: #{tpu_custom_call.1} parent=1 // pred_check_branch
      %33 = sbr.rel (0) target = $region17
    $region16: #{tpu_custom_call.1} parent=1 // pred_region
      _
    $region17: #{tpu_custom_call.1} parent=1 // pred_fallthru
      _
    // Predicated region
    $region18: #{tpu_custom_call.1} parent=1 // pred_check
      _
    $region19: #{tpu_custom_call.1} parent=1 // pred_check_branch
      %35 = sbr.rel (0) target = $region21
    $region20: #{tpu_custom_call.1} parent=1 // pred_region
      _
    $region21: #{tpu_custom_call.1} parent=1 // pred_fallthru
      _
    // Predicated region
    $region22: #{tpu_custom_call.1} parent=1 // pred_check
      _
    $region23: #{tpu_custom_call.1} parent=1 // pred_check_branch
      %37 = sbr.rel (0) target = $region25
    $region24: #{tpu_custom_call.1} parent=1 // pred_region
      %s39 = ssub.s32 1024, 1024
      %40 = vsyncadd [#allocation6], %s39
      %s41 = sshll.u32 [#allocation5], 4
      %s42 = int_to_ptr.vmem [resolvable:$true] %s41
      %47 = dma.hbm_to_vmem [thread:$0]  %s5, 1024, %s42, [#allocation6], 64, 64, 4
    $region25: #{tpu_custom_call.1} parent=1 // pred_fallthru
      _
    // Predicated region
    $region26: #{tpu_custom_call.1} parent=1 // pred_check
      _
    $region27: #{tpu_custom_call.1} parent=1 // pred_check_branch
      %49 = sbr.rel (0) target = $region29
    $region28: #{tpu_custom_call.1} parent=1 // pred_region
      _
    $region29: #{tpu_custom_call.1} parent=1 // pred_fallthru
      _
    // Predicated region
    $region30: #{tpu_custom_call.1} parent=1 // pred_check
      _
    $region31: #{tpu_custom_call.1} parent=1 // pred_check_branch
      %51 = sbr.rel (0) target = $region33
    $region32: #{tpu_custom_call.1} parent=1 // pred_region
      _
    $region33: #{tpu_custom_call.1} parent=1 // pred_fallthru
      _
    // Predicated region
    $region34: #{tpu_custom_call.1} parent=1 // pred_check
      _
    $region35: #{tpu_custom_call.1} parent=1 // pred_check_branch
      %53 = sbr.rel (0) target = $region37
    $region36: #{tpu_custom_call.1} parent=1 // pred_region
      %54 = dma.done [#allocation3], 256
    $region37: #{tpu_custom_call.1} parent=1 // pred_fallthru
      _
    // Predicated region
    $region38: #{tpu_custom_call.1} parent=1 // pred_check
      _
    $region39: #{tpu_custom_call.1} parent=1 // pred_check_branch
      %56 = sbr.rel (0) target = $region41
    $region40: #{tpu_custom_call.1} parent=1 // pred_region
      %57 = dma.done [#allocation6], 1024
    $region41: #{tpu_custom_call.1} parent=1 // pred_fallthru
      _
    %v59 = vld [vmem:[%s0] sm:$0xff]
    %v60 = vld [vmem:[%s0 + $0x8] sm:$0xff]
    %v61 = vpack.c.bf16 %v60, %v59
    %v62 = vld [vmem:[%s1] sm:$0xff]
    %v63 = vld [vmem:[%s1 + $0x8] sm:$0xff]
    %v64 = vld [vmem:[#allocation2] sm:$0xf]
    %v65 = vld [vmem:[#allocation2 + $0x4] sm:$0xf]
    %v66 = vld [vmem:[#allocation2 + $0x8] sm:$0xf]
    %v67 = vld [vmem:[#allocation2 + $0xc] sm:$0xf]
    %v68 = vld [vmem:[%s4] sm:$0x1]
    %69 = vset.pattern.permute.xlu0 0
    %70 = vperm.xlu0 %69, %v62
    %v71 = vpop.permute.xlu0 %70
    %72 = vset.pattern.permute.xlu0 0
    %73 = vperm.xlu0 %72, %v63
    %v74 = vpop.permute.xlu0 %73
    %v75 = vld [vmem:[%s3] sm:$0x1]
    %vm76 = vcmp.eq.s32.totalorder %v75, 1
    %77 = vset.pattern.permute.xlu0 1
    %78 = vperm.xlu0 %77, %v62
    %v79 = vpop.permute.xlu0 %78
    %80 = vset.pattern.permute.xlu0 1
    %81 = vperm.xlu0 %80, %v63
    %v82 = vpop.permute.xlu0 %81
    %v83 = vsel %vm76, 1, 0
    %v84 = vlaneseq
    %v85 = vshrl.u32 %v84, 7
    %v86 = vsub.s32 0, %v85
    %v87 = vrot.slane %v83, %v86
    %vm88 = vcmp.eq.s32.totalorder %v87, 1
    %v89 = vsel %vm88, %v79, %v71
    %v90 = vsel %vm88, %v82, %v74
    %vm91 = vcmp.eq.s32.totalorder %v75, 2
    %92 = vset.pattern.permute.xlu0 2
    %93 = vperm.xlu0 %92, %v62
    %v94 = vpop.permute.xlu0 %93
    %95 = vset.pattern.permute.xlu0 2
    %96 = vperm.xlu0 %95, %v63
    %v97 = vpop.permute.xlu0 %96
    %v98 = vsel %vm91, 1, 0
    %v99 = vlaneseq
    %v100 = vshrl.u32 %v99, 7
    %v101 = vsub.s32 0, %v100
    %v102 = vrot.slane %v98, %v101
    %vm103 = vcmp.eq.s32.totalorder %v102, 1
    %v104 = vsel %vm103, %v94, %v89
    %v105 = vsel %vm103, %v97, %v90
    %v106 = vlaneseq
    %v107 = vshrl.u32 %v106, 7
    %v108 = vsub.s32 0, %v107
    %v109 = vrot.slane %v68, %v108
    %vm110 = vcmp.eq.s32.totalorder %v104, %v109
    %vm111 = vcmp.eq.s32.totalorder %v105, %v109
    %v112 = vsel %vm110, 1, 0
    %v113 = vsel %vm111, 1, 0
    %v114 = vcvt.s32.f32 %v112
    %v115 = vcvt.s32.f32 %v113
    %v116 = vpack.c.bf16 %v115, %v114
    %v117 = vld [vmem:[#allocation5] sm:$0xf]
    %v118 = vld [vmem:[#allocation5 + $0x4] sm:$0xf]
    %v119 = vld [vmem:[#allocation5 + $0x8] sm:$0xf]
    %v120 = vld [vmem:[#allocation5 + $0xc] sm:$0xf]
    %v121 = vld [vmem:[#allocation5 + $0x10] sm:$0xf]
    %v122 = vld [vmem:[#allocation5 + $0x14] sm:$0xf]
    %v123 = vld [vmem:[#allocation5 + $0x18] sm:$0xf]
    %v124 = vld [vmem:[#allocation5 + $0x1c] sm:$0xf]
    %v125 = vld [vmem:[#allocation5 + $0x20] sm:$0xf]
    %v126 = vld [vmem:[#allocation5 + $0x24] sm:$0xf]
    %v127 = vld [vmem:[#allocation5 + $0x28] sm:$0xf]
    %v128 = vld [vmem:[#allocation5 + $0x2c] sm:$0xf]
    %v129 = vld [vmem:[#allocation5 + $0x30] sm:$0xf]
    %v130 = vld [vmem:[#allocation5 + $0x34] sm:$0xf]
    %v131 = vld [vmem:[#allocation5 + $0x38] sm:$0xf]
    %v132 = vld [vmem:[#allocation5 + $0x3c] sm:$0xf]
    %v149 = vunpack.c.l.b16 %v117
    %v150 = vunpack.c.l.b16 %v118
    %v151 = vunpack.c.l.b16 %v119
    %v152 = vunpack.c.l.b16 %v120
    %v153 = vunpack.c.l.b16 %v121
    %v154 = vunpack.c.l.b16 %v122
    %v155 = vunpack.c.l.b16 %v123
    %v156 = vunpack.c.l.b16 %v124
    %v157 = vunpack.c.l.b16 %v125
    %v158 = vunpack.c.l.b16 %v126
    %v159 = vunpack.c.l.b16 %v127
    %v160 = vunpack.c.l.b16 %v128
    %v161 = vunpack.c.l.b16 %v129
    %v162 = vunpack.c.l.b16 %v130
    %v163 = vunpack.c.l.b16 %v131
    %v164 = vunpack.c.l.b16 %v132
    %v165 = vpack.c.b16 %v150, %v149
    %v166 = vpack.c.b16 %v152, %v151
    %v167 = vpack.c.b16 %v154, %v153
    %v168 = vpack.c.b16 %v156, %v155
    %v169 = vpack.c.b16 %v158, %v157
    %v170 = vpack.c.b16 %v160, %v159
    %v171 = vpack.c.b16 %v162, %v161
    %v172 = vpack.c.b16 %v164, %v163
    %181 = vmatprep.subr.bf16.mxu0 0
    %182 = vmatpush1.bf16.msra.mxu0 %v165
    %183 = vmatprep.subr.bf16.mxu0 0
    %184 = vmatpush1.bf16.msra.mxu0 %v166
    %185 = vmatprep.subr.bf16.mxu0 0
    %186 = vmatpush1.bf16.msra.mxu0 %v167
    %187 = vmatprep.subr.bf16.mxu0 0
    %188 = vmatpush1.bf16.msra.mxu0 %v168
    %189 = vmatprep.subr.bf16.mxu0 0
    %190 = vmatpush1.bf16.msra.mxu0 %v169
    %191 = vmatprep.subr.bf16.mxu0 0
    %192 = vmatpush1.bf16.msra.mxu0 %v170
    %193 = vmatprep.subr.bf16.mxu0 0
    %194 = vmatpush1.bf16.msra.mxu0 %v171
    %195 = vmatprep.subr.bf16.mxu0 0
    %196 = vmatpush1.bf16.msra.mxu0 %v172
    %197 = vmatprep.subr.bf16.mxu0 0
    %198 = vmatpush1.bf16.msra.mxu0 0
    %199 = vmatprep.subr.bf16.mxu0 0
    %200 = vmatpush1.bf16.msra.mxu0 0
    %201 = vmatprep.subr.bf16.mxu0 0
    %202 = vmatpush1.bf16.msra.mxu0 0
    %203 = vmatprep.subr.bf16.mxu0 0
    %204 = vmatpush1.bf16.msra.mxu0 0
    %205 = vmatprep.subr.bf16.mxu0 0
    %206 = vmatpush1.bf16.msra.mxu0 0
    %207 = vmatprep.subr.bf16.mxu0 0
    %208 = vmatpush1.bf16.msra.mxu0 0
    %209 = vmatprep.subr.bf16.mxu0 0
    %210 = vmatpush1.bf16.msra.mxu0 0
    %211 = vmatprep.subr.bf16.mxu0 0
    %212 = vmatpush1.bf16.msra.mxu0 0
    %213 = vmatprep.mubr.bf16.mxu0 0
    %214 = vmatmul.mubr.bf16.gmra.mrb[0].mxu0 %v116
    %v215 = vpop.f32.mrb[0].mxu0
    %v216 = vadd.f32 0.0, %v215
    %v217 = vpop.f32.mrb[0].mxu0
    %v218 = vpop.f32.mrb[0].mxu0
    %v219 = vadd.f32 0.0, %v218
    %v220 = vpop.f32.mrb[0].mxu0
    %221 = vdwg.mxu0
    %v226 = vunpack.c.l.b16 %v64
    %v227 = vunpack.c.l.b16 %v65
    %v228 = vunpack.c.l.b16 %v66
    %v229 = vunpack.c.l.b16 %v67
    %v230 = vpack.c.b16 %v227, %v226
    %v231 = vpack.c.b16 %v229, %v228
    %vm234 = vcmask 261120
    %v236 = vsel %vm234, %v61, 0
    %238 = vmatprep.subr.bf16.mxu0 0
    %239 = vmatpush1.bf16.msra.mxu0 %v230
    %240 = vmatprep.subr.bf16.mxu0 0
    %241 = vmatpush1.bf16.msra.mxu0 %v231
    %242 = vmatprep.subr.bf16.mxu0 0
    %243 = vmatpush1.bf16.msra.mxu0 0
    %244 = vmatprep.subr.bf16.mxu0 0
    %245 = vmatpush1.bf16.msra.mxu0 0
    %246 = vmatprep.subr.bf16.mxu0 0
    %247 = vmatpush1.bf16.msra.mxu0 0
    %248 = vmatprep.subr.bf16.mxu0 0
    %249 = vmatpush1.bf16.msra.mxu0 0
    %250 = vmatprep.subr.bf16.mxu0 0
    %251 = vmatpush1.bf16.msra.mxu0 0
    %252 = vmatprep.subr.bf16.mxu0 0
    %253 = vmatpush1.bf16.msra.mxu0 0
    %254 = vmatprep.subr.bf16.mxu0 0
    %255 = vmatpush1.bf16.msra.mxu0 0
    %256 = vmatprep.subr.bf16.mxu0 0
    %257 = vmatpush1.bf16.msra.mxu0 0
    %258 = vmatprep.subr.bf16.mxu0 0
    %259 = vmatpush1.bf16.msra.mxu0 0
    %260 = vmatprep.subr.bf16.mxu0 0
    %261 = vmatpush1.bf16.msra.mxu0 0
    %262 = vmatprep.subr.bf16.mxu0 0
    %263 = vmatpush1.bf16.msra.mxu0 0
    %264 = vmatprep.subr.bf16.mxu0 0
    %265 = vmatpush1.bf16.msra.mxu0 0
    %266 = vmatprep.subr.bf16.mxu0 0
    %267 = vmatpush1.bf16.msra.mxu0 0
    %268 = vmatprep.subr.bf16.mxu0 0
    %269 = vmatpush1.bf16.msra.mxu0 0
    %270 = vmatprep.mubr.bf16.mxu0 0
    %271 = vmatmul.mubr.bf16.gmra.mrb[0].mxu0 %v236
    %v272 = vpop.f32.mrb[0].mxu0
    %v273 = vadd.f32 %v216, %v272
    %v274 = vpop.f32.mrb[0].mxu0
    %v275 = vpop.f32.mrb[0].mxu0
    %v276 = vadd.f32 %v219, %v275
    %v277 = vpop.f32.mrb[0].mxu0
    %278 = vdwg.mxu0
    %v279 = vld [vmem:[%s6] sm:$0x1]
    %v281 = vlaneseq
    %v282 = vshrl.u32 %v281, 7
    %v283 = vsub.s32 0, %v282
    %v284 = vrot.slane %v279, %v283
    %v286 = vadd.f32 %v273, %v284
    %v287 = vadd.f32 %v276, %v284
    %v288 = vmax.f32 %v286, -50.0
    %v289 = vmax.f32 %v287, -50.0
    %v290 = vmin.f32 %v288, 50.0
    %v291 = vmin.f32 %v289, 50.0
    %v292 = vld [vmem:[%s7] sm:$0x1]
    %v294 = vlaneseq
    %v295 = vshrl.u32 %v294, 7
    %v296 = vsub.s32 0, %v295
    %v297 = vrot.slane %v292, %v296
    %v299 = vadd.f32 %v290, %v297
    %v300 = vadd.f32 %v291, %v297
    %v301 = vmul.f32 %v299, 1.442695
    %v302 = vpow.pop %v301
    %v303 = vmul.f32 %v300, 1.442695
    %v304 = vpow.pop %v303
    %305 = vadd.xlane.f32.xlu0 %v302
    %v306 = vpop.xlane.xlu0 %305
    %307 = vadd.xlane.f32.xlu0 %v304
    %v308 = vpop.xlane.xlu0 %307
    %v309 = vrcp.pop %v306
    %v310 = vrcp.pop %v308
    %v311 = vmul.f32 %v302, %v309
    %v312 = vmul.f32 %v304, %v310
    %v313 = vpack.c.bf16 %v312, %v311
    %v315 = vunpack.c.l.b16 %v313
    %v316 = vunpack.c.h.b16 %v313
    %v317 = vpack.c.b16 %v315, %v315
    %v318 = vpack.c.b16 %v316, %v316
    %321 = vst [vmem:[#allocation7] sm:$0xf] %v317
    %322 = vst [vmem:[#allocation7 + $0x4] sm:$0xf] %v318
    // Predicated region
    $region42: #{tpu_custom_call.1} parent=1 // pred_check
      _
    $region43: #{tpu_custom_call.1} parent=1 // pred_check_branch
      %324 = sbr.rel (0) target = $region45
    $region44: #{tpu_custom_call.1} parent=1 // pred_region
      %s326 = ssub.s32 128, 128
      %327 = vsyncadd [#allocation4], %s326
      %s328 = sshll.u32 [#allocation7], 4
      %s329 = int_to_ptr.vmem [resolvable:$true] %s328
      %334 = dma.vmem_to_hbm [thread:$0]  %s329, 128, %s8, [#allocation4], 64, 64, 4
    $region45: #{tpu_custom_call.1} parent=1 // pred_fallthru
      _
    // Predicated region
    $region46: #{tpu_custom_call.1} parent=1 // pred_check
      _
    $region47: #{tpu_custom_call.1} parent=1 // pred_check_branch
      %336 = sbr.rel (0) target = $region49
    $region48: #{tpu_custom_call.1} parent=1 // pred_region
      %337 = dma.done [#allocation4], 128
    $region49: #{tpu_custom_call.1} parent=1 // pred_fallthru
      _
    %338 = vsyncpa [#allocation3], 1
    %339 = vsyncpa [#allocation6], 1
    %340 = vsyncpa [#allocation4], 1

// kernel: tpu_custom_call.1
$region0: #{tpu_custom_call.1}
  #allocation0 [shape = 'u32[]', space=smem, size = 0x4, offset = 0x4, fixed_abs, tag = 'smem constant byte address 0x4 - core index']
  #allocation1 [shape = 'u32[144,128]{1,0:T(1,128)}', space=vmem, size = 0x12000, scoped, tag = 'internal scratch']
  %s0 = inlined_call_operand.vmem [shape: f32[16,32], index: 0, kind: input, shape index: {}]
  %s1 = inlined_call_operand.vmem [shape: s32[16,3], index: 1, kind: input, shape index: {}]
  %s2 = inlined_call_operand.hbm [shape: bf16[32,128], index: 2, kind: input, shape index: {}]
  %s3 = inlined_call_operand.vmem [shape: s32[1,128], index: 3, kind: input, shape index: {}]
  %s4 = inlined_call_operand.vmem [shape: s32[1,128], index: 4, kind: input, shape index: {}]
  %s5 = inlined_call_operand.hbm [shape: bf16[128,128], index: 5, kind: input, shape index: {}]
  %s6 = inlined_call_operand.vmem [shape: f32[1,128], index: 6, kind: input, shape index: {}]
  %s7 = inlined_call_operand.vmem [shape: f32[1,128], index: 7, kind: input, shape index: {}]
  %s8 = inlined_call_operand.hbm [shape: bf16[16,128], index: 8, kind: output, shape index: {}]
  %s9 = sld [smem:[#allocation0]]
  $region50: #{tpu_custom_call.1} parent=0
    _
  %s11 = ssub.s32 1, %s9
  %s12 = scalar_select 0, %s11, %s9
  $region1: #{tpu_custom_call.1} parent=0
    #allocation2 [shape = 'u8[8192]{0}', space=vmem, size = 0x2000, scoped, tag = 'input window, operand 2, single buffered']
    #allocation3 [shape = 's32[1]{0}', space=sflag, size = 0x4, scoped, tag = 'scoped memory for tpu_custom_call.1']
    #allocation4 [shape = 's32[1]{0}', space=sflag, size = 0x4, scoped, tag = 'scoped memory for tpu_custom_call.1']
    #allocation5 [shape = 'u8[32768]{0}', space=vmem, size = 0x8000, scoped, tag = 'input window, operand 5, single buffered']
    #allocation6 [shape = 's32[1]{0}', space=sflag, size = 0x4, scoped, tag = 'scoped memory for tpu_custom_call.1']
    #allocation7 [shape = 'u8[4096]{0}', space=vmem, size = 0x1000, scoped, tag = 'output window, operand 0, single buffered']
    %13 = vsyncpa [#allocation3], 0
    %14 = vsyncpa [#allocation6], 0
    %15 = vsyncpa [#allocation4], 0
    // Predicated region
    $region2: #{tpu_custom_call.1} parent=1 // pred_check
      _
    $region3: #{tpu_custom_call.1} parent=1 // pred_check_branch
      %17 = sbr.rel (0) target = $region5
    $region4: #{tpu_custom_call.1} parent=1 // pred_region
      _
    $region5: #{tpu_custom_call.1} parent=1 // pred_fallthru
      _
    // Predicated region
    $region6: #{tpu_custom_call.1} parent=1 // pred_check
      _
    $region7: #{tpu_custom_call.1} parent=1 // pred_check_branch
      %19 = sbr.rel (0) target = $region9
    $region8: #{tpu_custom_call.1} parent=1 // pred_region
      _
    $region9: #{tpu_custom_call.1} parent=1 // pred_fallthru
      _
    // Predicated region
    $region10: #{tpu_custom_call.1} parent=1 // pred_check
      _
    $region11: #{tpu_custom_call.1} parent=1 // pred_check_branch
      %21 = sbr.rel (0) target = $region13
    $region12: #{tpu_custom_call.1} parent=1 // pred_region
      %s23 = ssub.s32 256, 256
      %24 = vsyncadd [#allocation3], %s23
      %s25 = sshll.u32 [#allocation2], 4
      %s26 = int_to_ptr.vmem [resolvable:$true] %s25
      %31 = dma.hbm_to_vmem [thread:$0]  %s2, 256, %s26, [#allocation3], 64, 64, 4
    $region13: #{tpu_custom_call.1} parent=1 // pred_fallthru
      _
    // Predicated region
    $region14: #{tpu_custom_call.1} parent=1 // pred_check
      _
    $region15: #{tpu_custom_call.1} parent=1 // pred_check_branch
      %33 = sbr.rel (0) target = $region17
    $region16: #{tpu_custom_call.1} parent=1 // pred_region
      _
    $region17: #{tpu_custom_call.1} parent=1 // pred_fallthru
      _
    // Predicated region
    $region18: #{tpu_custom_call.1} parent=1 // pred_check
      _
    $region19: #{tpu_custom_call.1} parent=1 // pred_check_branch
      %35 = sbr.rel (0) target = $region21
    $region20: #{tpu_custom_call.1} parent=1 // pred_region
      _
    $region21: #{tpu_custom_call.1} parent=1 // pred_fallthru
      _
    // Predicated region
    $region22: #{tpu_custom_call.1} parent=1 // pred_check
      _
    $region23: #{tpu_custom_call.1} parent=1 // pred_check_branch
      %37 = sbr.rel (0) target = $region25
    $region24: #{tpu_custom_call.1} parent=1 // pred_region
      %s39 = ssub.s32 1024, 1024
      %40 = vsyncadd [#allocation6], %s39
      %s41 = sshll.u32 [#allocation5], 4
      %s42 = int_to_ptr.vmem [resolvable:$true] %s41
      %47 = dma.hbm_to_vmem [thread:$0]  %s5, 1024, %s42, [#allocation6], 64, 64, 4
    $region25: #{tpu_custom_call.1} parent=1 // pred_fallthru
      _
    // Predicated region
    $region26: #{tpu_custom_call.1} parent=1 // pred_check
      _
    $region27: #{tpu_custom_call.1} parent=1 // pred_check_branch
      %49 = sbr.rel (0) target = $region29
    $region28: #{tpu_custom_call.1} parent=1 // pred_region
      _
    $region29: #{tpu_custom_call.1} parent=1 // pred_fallthru
      _
    // Predicated region
    $region30: #{tpu_custom_call.1} parent=1 // pred_check
      _
    $region31: #{tpu_custom_call.1} parent=1 // pred_check_branch
      %51 = sbr.rel (0) target = $region33
    $region32: #{tpu_custom_call.1} parent=1 // pred_region
      _
    $region33: #{tpu_custom_call.1} parent=1 // pred_fallthru
      _
    // Predicated region
    $region34: #{tpu_custom_call.1} parent=1 // pred_check
      _
    $region35: #{tpu_custom_call.1} parent=1 // pred_check_branch
      %53 = sbr.rel (0) target = $region37
    $region36: #{tpu_custom_call.1} parent=1 // pred_region
      %54 = dma.done [#allocation3], 256
    $region37: #{tpu_custom_call.1} parent=1 // pred_fallthru
      _
    // Predicated region
    $region38: #{tpu_custom_call.1} parent=1 // pred_check
      _
    $region39: #{tpu_custom_call.1} parent=1 // pred_check_branch
      %56 = sbr.rel (0) target = $region41
    $region40: #{tpu_custom_call.1} parent=1 // pred_region
      %57 = dma.done [#allocation6], 1024
    $region41: #{tpu_custom_call.1} parent=1 // pred_fallthru
      _
    %v59 = vld [vmem:[%s0] sm:$0xff]
    %v60 = vld [vmem:[%s0 + $0x8] sm:$0xff]
    %v61 = vpack.c.bf16 %v60, %v59
    %v62 = vld [vmem:[%s1] sm:$0xff]
    %v63 = vld [vmem:[%s1 + $0x8] sm:$0xff]
    %v64 = vld [vmem:[#allocation2] sm:$0xf]
    %v65 = vld [vmem:[#allocation2 + $0x4] sm:$0xf]
    %v66 = vld [vmem:[#allocation2 + $0x8] sm:$0xf]
    %v67 = vld [vmem:[#allocation2 + $0xc] sm:$0xf]
    %v68 = vld [vmem:[%s4] sm:$0x1]
    %69 = vset.pattern.permute.xlu0 0
    %70 = vperm.xlu0 %69, %v62
    %v71 = vpop.permute.xlu0 %70
    %72 = vset.pattern.permute.xlu0 0
    %73 = vperm.xlu0 %72, %v63
    %v74 = vpop.permute.xlu0 %73
    %v75 = vld [vmem:[%s3] sm:$0x1]
    %vm76 = vcmp.eq.s32.totalorder %v75, 1
    %77 = vset.pattern.permute.xlu0 1
    %78 = vperm.xlu0 %77, %v62
    %v79 = vpop.permute.xlu0 %78
    %80 = vset.pattern.permute.xlu0 1
    %81 = vperm.xlu0 %80, %v63
    %v82 = vpop.permute.xlu0 %81
    %v83 = vsel %vm76, 1, 0
    %v84 = vlaneseq
    %v85 = vshrl.u32 %v84, 7
    %v86 = vsub.s32 0, %v85
    %v87 = vrot.slane %v83, %v86
    %vm88 = vcmp.eq.s32.totalorder %v87, 1
    %v89 = vsel %vm88, %v79, %v71
    %v90 = vsel %vm88, %v82, %v74
    %vm91 = vcmp.eq.s32.totalorder %v75, 2
    %92 = vset.pattern.permute.xlu0 2
    %93 = vperm.xlu0 %92, %v62
    %v94 = vpop.permute.xlu0 %93
    %95 = vset.pattern.permute.xlu0 2
    %96 = vperm.xlu0 %95, %v63
    %v97 = vpop.permute.xlu0 %96
    %v98 = vsel %vm91, 1, 0
    %v99 = vlaneseq
    %v100 = vshrl.u32 %v99, 7
    %v101 = vsub.s32 0, %v100
    %v102 = vrot.slane %v98, %v101
    %vm103 = vcmp.eq.s32.totalorder %v102, 1
    %v104 = vsel %vm103, %v94, %v89
    %v105 = vsel %vm103, %v97, %v90
    %v106 = vlaneseq
    %v107 = vshrl.u32 %v106, 7
    %v108 = vsub.s32 0, %v107
    %v109 = vrot.slane %v68, %v108
    %vm110 = vcmp.eq.s32.totalorder %v104, %v109
    %vm111 = vcmp.eq.s32.totalorder %v105, %v109
    %v112 = vsel %vm110, 1, 0
    %v113 = vsel %vm111, 1, 0
    %v114 = vcvt.s32.f32 %v112
    %v115 = vcvt.s32.f32 %v113
    %v116 = vpack.c.bf16 %v115, %v114
    %v117 = vld [vmem:[#allocation5] sm:$0xf]
    %v118 = vld [vmem:[#allocation5 + $0x4] sm:$0xf]
    %v119 = vld [vmem:[#allocation5 + $0x8] sm:$0xf]
    %v120 = vld [vmem:[#allocation5 + $0xc] sm:$0xf]
    %v121 = vld [vmem:[#allocation5 + $0x10] sm:$0xf]
    %v122 = vld [vmem:[#allocation5 + $0x14] sm:$0xf]
    %v123 = vld [vmem:[#allocation5 + $0x18] sm:$0xf]
    %v124 = vld [vmem:[#allocation5 + $0x1c] sm:$0xf]
    %v125 = vld [vmem:[#allocation5 + $0x20] sm:$0xf]
    %v126 = vld [vmem:[#allocation5 + $0x24] sm:$0xf]
    %v127 = vld [vmem:[#allocation5 + $0x28] sm:$0xf]
    %v128 = vld [vmem:[#allocation5 + $0x2c] sm:$0xf]
    %v129 = vld [vmem:[#allocation5 + $0x30] sm:$0xf]
    %v130 = vld [vmem:[#allocation5 + $0x34] sm:$0xf]
    %v131 = vld [vmem:[#allocation5 + $0x38] sm:$0xf]
    %v132 = vld [vmem:[#allocation5 + $0x3c] sm:$0xf]
    %v149 = vunpack.c.l.b16 %v117
    %v150 = vunpack.c.l.b16 %v118
    %v151 = vunpack.c.l.b16 %v119
    %v152 = vunpack.c.l.b16 %v120
    %v153 = vunpack.c.l.b16 %v121
    %v154 = vunpack.c.l.b16 %v122
    %v155 = vunpack.c.l.b16 %v123
    %v156 = vunpack.c.l.b16 %v124
    %v157 = vunpack.c.l.b16 %v125
    %v158 = vunpack.c.l.b16 %v126
    %v159 = vunpack.c.l.b16 %v127
    %v160 = vunpack.c.l.b16 %v128
    %v161 = vunpack.c.l.b16 %v129
    %v162 = vunpack.c.l.b16 %v130
    %v163 = vunpack.c.l.b16 %v131
    %v164 = vunpack.c.l.b16 %v132
    %v165 = vpack.c.b16 %v150, %v149
    %v166 = vpack.c.b16 %v152, %v151
    %v167 = vpack.c.b16 %v154, %v153
    %v168 = vpack.c.b16 %v156, %v155
    %v169 = vpack.c.b16 %v158, %v157
    %v170 = vpack.c.b16 %v160, %v159
    %v171 = vpack.c.b16 %v162, %v161
    %v172 = vpack.c.b16 %v164, %v163
    %181 = vmatprep.subr.bf16.mxu0 0
    %182 = vmatpush1.bf16.msra.mxu0 %v165
    %183 = vmatprep.subr.bf16.mxu0 0
    %184 = vmatpush1.bf16.msra.mxu0 %v166
    %185 = vmatprep.subr.bf16.mxu0 0
    %186 = vmatpush1.bf16.msra.mxu0 %v167
    %187 = vmatprep.subr.bf16.mxu0 0
    %188 = vmatpush1.bf16.msra.mxu0 %v168
    %189 = vmatprep.subr.bf16.mxu0 0
    %190 = vmatpush1.bf16.msra.mxu0 %v169
    %191 = vmatprep.subr.bf16.mxu0 0
    %192 = vmatpush1.bf16.msra.mxu0 %v170
    %193 = vmatprep.subr.bf16.mxu0 0
    %194 = vmatpush1.bf16.msra.mxu0 %v171
    %195 = vmatprep.subr.bf16.mxu0 0
    %196 = vmatpush1.bf16.msra.mxu0 %v172
    %197 = vmatprep.subr.bf16.mxu0 0
    %198 = vmatpush1.bf16.msra.mxu0 0
    %199 = vmatprep.subr.bf16.mxu0 0
    %200 = vmatpush1.bf16.msra.mxu0 0
    %201 = vmatprep.subr.bf16.mxu0 0
    %202 = vmatpush1.bf16.msra.mxu0 0
    %203 = vmatprep.subr.bf16.mxu0 0
    %204 = vmatpush1.bf16.msra.mxu0 0
    %205 = vmatprep.subr.bf16.mxu0 0
    %206 = vmatpush1.bf16.msra.mxu0 0
    %207 = vmatprep.subr.bf16.mxu0 0
    %208 = vmatpush1.bf16.msra.mxu0 0
    %209 = vmatprep.subr.bf16.mxu0 0
    %210 = vmatpush1.bf16.msra.mxu0 0
    %211 = vmatprep.subr.bf16.mxu0 0
    %212 = vmatpush1.bf16.msra.mxu0 0
    %213 = vmatprep.mubr.bf16.mxu0 0
    %214 = vmatmul.mubr.bf16.gmra.mrb[0].mxu0 %v116
    %v215 = vpop.f32.mrb[0].mxu0
    %v216 = vadd.f32 0.0, %v215
    %v217 = vpop.f32.mrb[0].mxu0
    %v218 = vpop.f32.mrb[0].mxu0
    %v219 = vadd.f32 0.0, %v218
    %v220 = vpop.f32.mrb[0].mxu0
    %221 = vdwg.mxu0
    %v226 = vunpack.c.l.b16 %v64
    %v227 = vunpack.c.l.b16 %v65
    %v228 = vunpack.c.l.b16 %v66
    %v229 = vunpack.c.l.b16 %v67
    %v230 = vpack.c.b16 %v227, %v226
    %v231 = vpack.c.b16 %v229, %v228
    %vm234 = vcmask 261120
    %v236 = vsel %vm234, %v61, 0
    %238 = vmatprep.subr.bf16.mxu0 0
    %239 = vmatpush1.bf16.msra.mxu0 %v230
    %240 = vmatprep.subr.bf16.mxu0 0
    %241 = vmatpush1.bf16.msra.mxu0 %v231
    %242 = vmatprep.subr.bf16.mxu0 0
    %243 = vmatpush1.bf16.msra.mxu0 0
    %244 = vmatprep.subr.bf16.mxu0 0
    %245 = vmatpush1.bf16.msra.mxu0 0
    %246 = vmatprep.subr.bf16.mxu0 0
    %247 = vmatpush1.bf16.msra.mxu0 0
    %248 = vmatprep.subr.bf16.mxu0 0
    %249 = vmatpush1.bf16.msra.mxu0 0
    %250 = vmatprep.subr.bf16.mxu0 0
    %251 = vmatpush1.bf16.msra.mxu0 0
    %252 = vmatprep.subr.bf16.mxu0 0
    %253 = vmatpush1.bf16.msra.mxu0 0
    %254 = vmatprep.subr.bf16.mxu0 0
    %255 = vmatpush1.bf16.msra.mxu0 0
    %256 = vmatprep.subr.bf16.mxu0 0
    %257 = vmatpush1.bf16.msra.mxu0 0
    %258 = vmatprep.subr.bf16.mxu0 0
    %259 = vmatpush1.bf16.msra.mxu0 0
    %260 = vmatprep.subr.bf16.mxu0 0
    %261 = vmatpush1.bf16.msra.mxu0 0
    %262 = vmatprep.subr.bf16.mxu0 0
    %263 = vmatpush1.bf16.msra.mxu0 0
    %264 = vmatprep.subr.bf16.mxu0 0
    %265 = vmatpush1.bf16.msra.mxu0 0
    %266 = vmatprep.subr.bf16.mxu0 0
    %267 = vmatpush1.bf16.msra.mxu0 0
    %268 = vmatprep.subr.bf16.mxu0 0
    %269 = vmatpush1.bf16.msra.mxu0 0
    %270 = vmatprep.mubr.bf16.mxu0 0
    %271 = vmatmul.mubr.bf16.gmra.mrb[0].mxu0 %v236
    %v272 = vpop.f32.mrb[0].mxu0
    %v273 = vadd.f32 %v216, %v272
    %v274 = vpop.f32.mrb[0].mxu0
    %v275 = vpop.f32.mrb[0].mxu0
    %v276 = vadd.f32 %v219, %v275
    %v277 = vpop.f32.mrb[0].mxu0
    %278 = vdwg.mxu0
    %v279 = vld [vmem:[%s6] sm:$0x1]
    %v281 = vlaneseq
    %v282 = vshrl.u32 %v281, 7
    %v283 = vsub.s32 0, %v282
    %v284 = vrot.slane %v279, %v283
    %v286 = vadd.f32 %v273, %v284
    %v287 = vadd.f32 %v276, %v284
    %v288 = vmax.f32 %v286, -50.0
    %v289 = vmax.f32 %v287, -50.0
    %v290 = vmin.f32 %v288, 50.0
    %v291 = vmin.f32 %v289, 50.0
    %v292 = vld [vmem:[%s7] sm:$0x1]
    %v294 = vlaneseq
    %v295 = vshrl.u32 %v294, 7
    %v296 = vsub.s32 0, %v295
    %v297 = vrot.slane %v292, %v296
    %v299 = vadd.f32 %v290, %v297
    %v300 = vadd.f32 %v291, %v297
    %v301 = vmul.f32 %v299, 1.442695
    %v302 = vpow.pop %v301
    %v303 = vmul.f32 %v300, 1.442695
    %v304 = vpow.pop %v303
    %305 = vadd.xlane.f32.xlu0 %v302
    %v306 = vpop.xlane.xlu0 %305
    %307 = vadd.xlane.f32.xlu0 %v304
    %v308 = vpop.xlane.xlu0 %307
    %v309 = vrcp.pop %v306
    %v310 = vrcp.pop %v308
    %v311 = vmul.f32 %v302, %v309
    %v312 = vmul.f32 %v304, %v310
    %v313 = vpack.c.bf16 %v312, %v311
    %v315 = vunpack.c.l.b16 %v313
    %v316 = vunpack.c.h.b16 %v313
    %v317 = vpack.c.b16 %v315, %v315
    %v318 = vpack.c.b16 %v316, %v316
    %321 = vst [vmem:[#allocation7] sm:$0xf] %v317
    %322 = vst [vmem:[#allocation7 + $0x4] sm:$0xf] %v318
    // Predicated region
    $region42: #{tpu_custom_call.1} parent=1 // pred_check
      _
    $region43: #{tpu_custom_call.1} parent=1 // pred_check_branch
      %324 = sbr.rel (0) target = $region45
    $region44: #{tpu_custom_call.1} parent=1 // pred_region
      %s326 = ssub.s32 128, 128
      %327 = vsyncadd [#allocation4], %s326
      %s328 = sshll.u32 [#allocation7], 4
      %s329 = int_to_ptr.vmem [resolvable:$true] %s328
      %334 = dma.vmem_to_hbm [thread:$0]  %s329, 128, %s8, [#allocation4], 64, 64, 4
    $region45: #{tpu_custom_call.1} parent=1 // pred_fallthru
      _
    // Predicated region
    $region46: #{tpu_custom_call.1} parent=1 // pred_check
      _
    $region47: #{tpu_custom_call.1} parent=1 // pred_check_branch
      %336 = sbr.rel (0) target = $region49
    $region48: #{tpu_custom_call.1} parent=1 // pred_region
      %337 = dma.done [#allocation4], 128
    $region49: #{tpu_custom_call.1} parent=1 // pred_fallthru
      _
    %338 = vsyncpa [#allocation3], 1
    %339 = vsyncpa [#allocation6], 1
    %340 = vsyncpa [#allocation4], 1

</llo_original>
